<compile_context>
chip_gen: v7x
topology: tpu7x:2x2x1
jax: 0.10.0
libtpu: 0.0.40
codegen_flags: <defaults>
</compile_context>

<pallas_src>
import jax
import jax.numpy as jnp
from jax import lax
from jax.experimental import pallas as pl
from jax.experimental.pallas import tpu as pltpu


def _round_up(x, m):
    return ((x + m - 1) // m) * m


def _linear_o1_kernel(x_ref, w_ref, b_ref, o_ref):
    """output_size == 1 specialization.

    x_ref: (tb, D) VMEM   w_ref: (1, D) VMEM   b_ref: (1,) SMEM   o_ref: (1, tb) VMEM
    Computes the lane-dense transposed result y^T = w @ x^T.
    """
    yt = lax.dot_general(
        w_ref[...], x_ref[...],
        dimension_numbers=(((1,), (1,)), ((), ())),   # contract over D, native layouts
        preferred_element_type=jnp.float32,
    )                                                  # (1, tb)
    o_ref[...] = yt + b_ref[0]                         # scalar bias read from SMEM


def _linear_general_kernel(x_ref, w_ref, b_ref, o_ref):
    """General output_size path.

    x_ref: (tb, D) VMEM   w_ref: (O, D) VMEM   b_ref: (O, 1) VMEM   o_ref: (O, tb) VMEM
    """
    yt = lax.dot_general(
        w_ref[...], x_ref[...],
        dimension_numbers=(((1,), (1,)), ((), ())),
        preferred_element_type=jnp.float32,
    )                                                  # (O, tb)
    o_ref[...] = yt + b_ref[...]                       # (O, 1) column bias broadcast


# VMEM accounting (lane-padded): one x buffer = tb * round_up(D, 128) * 4 bytes.
_X_PIPELINE_BUDGET = 12 << 20    # conservative; fits v5e's 16 MiB scoped-VMEM default
_MAX_BLOCK_B = 8192              # 4 MiB/buffer padded @ D<=128: amortizes ~0.35us/step


def _pick_block_b(B, D, buffers):
    """Choose a batch tile: as fat as the padded-VMEM budget allows (<=8192),
    a multiple of 128 (lane-dense output block), and >= 2 grid steps when there
    is enough work so both v7x TensorCores are used."""
    per_row = _round_up(D, 128) * 4                     # padded bytes per x row / buffer
    cap = (_X_PIPELINE_BUDGET // (buffers * per_row)) // 128 * 128
    cap = max(128, min(_MAX_BLOCK_B, cap))
    if B <= 128:
        return B                                        # single full-extent block
    half = _round_up(pl.cdiv(B, 2), 128)                # >= 2 "parallel" steps
    return min(cap, half)


def mock_model_forward(x, w, b, *, block_b=None, buffers=2, use_pallas=None):
    """y = x @ w.T + b  (PyTorch nn.Linear semantics for 2-D input).

    x: (B, in_features) f32
    w: (out_features, in_features) f32   -- native nn.Linear layout, no transpose
    b: (out_features,) f32
    block_b: optional batch-tile override; must equal B or be a multiple of 128.
    buffers: pipeline depth for the x input (2 = default double buffering).
    use_pallas: None = auto (plain XLA below ~16K rows), True/False to force.
    """
    B, D = x.shape
    O, D2 = w.shape
    assert D == D2 and b.shape == (O,)
    assert buffers >= 2

    if use_pallas is None:
        # Small-batch fast path: the pallas_call is pure launch + DMA-descriptor
        # overhead at these sizes; XLA fuses the tiny matmul trivially.
        use_pallas = B >= 16384
    if not use_pallas:
        return x @ w.T + b

    if block_b is None:
        tb = _pick_block_b(B, D, buffers)
    else:
        tb = block_b
        if tb != B and tb % 128 != 0:
            raise ValueError("block_b must equal B or be a multiple of 128")
    grid = (pl.cdiv(B, tb),)

    if O == 1:
        kernel = _linear_o1_kernel
        bias_arg = b                                              # (1,) -> SMEM scalar
        bias_spec = pl.BlockSpec(memory_space=pltpu.MemorySpace.SMEM)
    else:
        kernel = _linear_general_kernel
        bias_arg = b.reshape(O, 1)                                # (O, 1) -> VMEM column
        bias_spec = pl.BlockSpec((O, 1), lambda i: (0, 0))

    x_spec_kwargs = {}
    if buffers > 2 and grid[0] > 1:
        x_spec_kwargs["pipeline_mode"] = pl.Buffered(buffers)     # deeper x pipelining
    x_spec = pl.BlockSpec((tb, D), lambda i: (i, 0), **x_spec_kwargs)

    cost = pl.CostEstimate(
        flops=2 * B * D * O,
        transcendentals=0,
        bytes_accessed=4 * (B * D + O * D + O + O * B),
    )

    yt = pl.pallas_call(
        kernel,
        out_shape=jax.ShapeDtypeStruct((O, B), jnp.float32),
        grid=grid,
        in_specs=[
            x_spec,                                     # batch-tiled activations
            pl.BlockSpec((O, D), lambda i: (0, 0)),     # resident weight, native (O, D)
            bias_spec,
        ],
        out_specs=pl.BlockSpec((O, tb), lambda i: (0, i)),   # lane-dense output slab
        compiler_params=pltpu.CompilerParams(
            dimension_semantics=("parallel",),          # batch tiles are independent
        ),
        cost_estimate=cost,
    )(x, w, bias_arg)

    if O == 1:
        # The (1, B) row is contiguous, so this reshape is metadata-only (no HBM copy).
        return yt.reshape(B, 1)
    # TODO(synk): for O > 1 prefer consuming (O, B) directly / fusing the transpose
    # downstream; materializing it here costs 2*O*B*4 extra HBM bytes on a BW-bound op.
    return yt.T


def init_params(key, input_size=10, output_size=1):
    """Deterministic init mimicking nn.Linear's default U(-1/sqrt(in), 1/sqrt(in))."""
    kw, kb = jax.random.split(key)
    bound = 1.0 / jnp.sqrt(jnp.float32(input_size))
    w = jax.random.uniform(kw, (output_size, input_size), jnp.float32, -bound, bound)
    b = jax.random.uniform(kb, (output_size,), jnp.float32, -bound, bound)
    return w, b


if __name__ == "__main__":
    input_size, output_size, batch = 10, 1, 8

    key = jax.random.PRNGKey(0)
    k_x, k_p, k_x2, k_p2 = jax.random.split(key, 4)

    # 1) Spec-parity shape: MockModel() default linear, batch = 8, forced Pallas path.
    x = jax.random.normal(k_x, (batch, input_size), jnp.float32)
    w, b = init_params(k_p, input_size, output_size)
    y = jax.block_until_ready(mock_model_forward(x, w, b, use_pallas=True))
    y_ref = x @ w.T + b
    assert y.shape == (batch, output_size)
    assert jnp.allclose(y, y_ref, atol=1e-5, rtol=1e-5)

    # 1b) Auto small-batch fast path (no pallas_call) matches the kernel numbers.
    y_fast = jax.block_until_ready(mock_model_forward(x, w, b))
    assert jnp.allclose(y_fast, y, atol=1e-6, rtol=1e-6)

    # 2) Gridded / pipelined path: default tiling gives 2 "parallel" 128-row steps.
    xb = jax.random.normal(k_x2, (256, input_size), jnp.float32)
    yb = jax.block_until_ready(mock_model_forward(xb, w, b, use_pallas=True))
    assert jnp.allclose(yb, xb @ w.T + b, atol=1e-5, rtol=1e-5)

    # 3) General output_size path (VMEM column bias), output_size = 4.
    w4, b4 = init_params(k_p2, input_size, 4)
    y4 = jax.block_until_ready(mock_model_forward(xb, w4, b4, use_pallas=True))
    assert jnp.allclose(y4, xb @ w4.T + b4, atol=1e-4, rtol=1e-5)

    print("KERNEL_OK")
</pallas_src>

<mosaic_0001>
module attributes {stable_mosaic.version = 11 : i64} {
  func.func @_linear_o1_kernel(%arg0: i32, %arg1: memref<8x10xf32, #tpu.memory_space<vmem>>, %arg2: memref<1x10xf32, #tpu.memory_space<vmem>>, %arg3: memref<1xf32, #tpu.memory_space<smem>>, %arg4: memref<1x8xf32, #tpu.memory_space<vmem>>) attributes {dimension_semantics = [#tpu.dimension_semantics<parallel>], iteration_bounds = array<i64: 1>, scalar_prefetch = 0 : i64, scratch_operands = 0 : i64, tpu.core_type = #tpu.core_type<tc>, window_params = [{transform_indices = @transform_0, window_bounds = array<i64: 8, 10>}, {pipeline_mode = #tpu.pipeline_mode<synchronous>, transform_indices = @transform_1, window_bounds = array<i64: 1, 10>}, {transform_indices = @transform_2, window_bounds = array<i64: 1>}, {transform_indices = @transform_3, window_bounds = array<i64: 1, 8>}]} {
    %c0 = arith.constant 0 : index
    %c0_0 = arith.constant 0 : index
    %0 = vector.load %arg2[%c0, %c0_0] : memref<1x10xf32, #tpu.memory_space<vmem>>, vector<1x10xf32>
    %c0_1 = arith.constant 0 : index
    %c0_2 = arith.constant 0 : index
    %1 = vector.load %arg1[%c0_1, %c0_2] : memref<8x10xf32, #tpu.memory_space<vmem>>, vector<8x10xf32>
    %cst = arith.constant dense<0.000000e+00> : vector<1x8xf32>
    %2 = tpu.matmul %0, %1, %cst {dimension_numbers = #tpu.dot_dimension_numbers<[1], [1], [0], [0], [0, 0, 1, 0], [], []>} : vector<1x10xf32>, vector<8x10xf32>, vector<1x8xf32> -> vector<1x8xf32>
    %c0_3 = arith.constant 0 : index
    %3 = memref.load %arg3[%c0_3] : memref<1xf32, #tpu.memory_space<smem>>
    %4 = vector.broadcast %3 : f32 to vector<1x8xf32>
    %5 = arith.addf %2, %4 : vector<1x8xf32>
    %c0_4 = arith.constant 0 : index
    %c0_5 = arith.constant 0 : index
    %6 = vector.load %arg4[%c0_4, %c0_5] : memref<1x8xf32, #tpu.memory_space<vmem>>, vector<1x8xf32>
    tpu.vector_store %arg4[%c0_4, %c0_5], %5 {strides = array<i32>} : memref<1x8xf32, #tpu.memory_space<vmem>>, vector<1x8xf32>,
    return
  }
  func.func @transform_0(%arg0: i32) -> (i32, i32) {
    %c0_i32 = arith.constant 0 : i32
    %c0_i32_0 = arith.constant 0 : i32
    return %arg0, %c0_i32 : i32, i32
  }
  func.func @transform_1(%arg0: i32) -> (i32, i32) {
    %c0_i32 = arith.constant 0 : i32
    %c0_i32_0 = arith.constant 0 : i32
    %c0_i32_1 = arith.constant 0 : i32
    return %c0_i32, %c0_i32_0 : i32, i32
  }
  func.func @transform_2(%arg0: i32) -> i32 {
    %c0_i32 = arith.constant 0 : i32
    %c0_i32_0 = arith.constant 0 : i32
    return %c0_i32 : i32
  }
  func.func @transform_3(%arg0: i32) -> (i32, i32) {
    %c0_i32 = arith.constant 0 : i32
    %c0_i32_0 = arith.constant 0 : i32
    return %c0_i32, %arg0 : i32, i32
  }
}

</mosaic_0001>

<llo_original>
// kernel: tpu_custom_call.1
$region0: #{tpu_custom_call.1}
  #allocation0 [shape = 'u32[]', space=smem, size = 0x4, offset = 0x4, fixed_abs, tag = 'smem constant byte address 0x4 - core index']
  #allocation1 [shape = 'u32[144,128]{1,0:T(1,128)}', space=vmem, size = 0x12000, scoped, tag = 'internal scratch']
  #allocation2 [shape = 'f32[1]{0:T(128)S(6)}', space=smem, size = 0x200, scoped, tag = 'scoped memory for tpu_custom_call.1']
  %s0 = inlined_call_operand.hbm [shape: f32[8,10], index: 0, kind: input, shape index: {}]
  %s1 = inlined_call_operand.vmem [shape: f32[1,10], index: 1, kind: input, shape index: {}]
  %s2 = inlined_call_operand.<no memory space> [shape: f32[1], index: 2, kind: input, shape index: {}]
  %s3 = inlined_call_operand.hbm [shape: f32[1,8], index: 3, kind: output, shape index: {}]
  %s4 = sld [smem:[#allocation0]]
  $region26: #{tpu_custom_call.1} parent=0
    _
  %s6 = ssub.s32 1, %s4
  %s7 = scalar_select 0, %s6, %s4
  %8 = sst [smem:[#allocation2]] %s2
  $region1: #{tpu_custom_call.1} parent=0
    #allocation3 [shape = 'u8[4096]{0}', space=vmem, size = 0x1000, scoped, tag = 'input window, operand 0, single buffered']
    #allocation4 [shape = 's32[1]{0}', space=sflag, size = 0x4, scoped, tag = 'scoped memory for tpu_custom_call.1']
    #allocation5 [shape = 's32[1]{0}', space=sflag, size = 0x4, scoped, tag = 'scoped memory for tpu_custom_call.1']
    #allocation6 [shape = 'u8[512]{0}', space=vmem, size = 0x400, scoped, tag = 'output window, operand 0, single buffered']
    %9 = vsyncpa [#allocation4], 0
    %10 = vsyncpa [#allocation5], 0
    // Predicated region
    $region2: #{tpu_custom_call.1} parent=1 // pred_check
      _
    $region3: #{tpu_custom_call.1} parent=1 // pred_check_branch
      %12 = sbr.rel (0) target = $region5
    $region4: #{tpu_custom_call.1} parent=1 // pred_region
      %s14 = ssub.s32 128, 128
      %15 = vsyncadd [#allocation4], %s14
      %s17 = sshll.u32 [#allocation3], 4
      %s18 = int_to_ptr.vmem [resolvable:$true] %s17
      %20 = dma.hbm_to_vmem [thread:$0]  %s0, 128, %s18, [#allocation4]
    $region5: #{tpu_custom_call.1} parent=1 // pred_fallthru
      _
    // Predicated region
    $region6: #{tpu_custom_call.1} parent=1 // pred_check
      _
    $region7: #{tpu_custom_call.1} parent=1 // pred_check_branch
      %22 = sbr.rel (0) target = $region9
    $region8: #{tpu_custom_call.1} parent=1 // pred_region
      _
    $region9: #{tpu_custom_call.1} parent=1 // pred_fallthru
      _
    // Predicated region
    $region10: #{tpu_custom_call.1} parent=1 // pred_check
      _
    $region11: #{tpu_custom_call.1} parent=1 // pred_check_branch
      %24 = sbr.rel (0) target = $region13
    $region12: #{tpu_custom_call.1} parent=1 // pred_region
      _
    $region13: #{tpu_custom_call.1} parent=1 // pred_fallthru
      _
    // Predicated region
    $region14: #{tpu_custom_call.1} parent=1 // pred_check
      _
    $region15: #{tpu_custom_call.1} parent=1 // pred_check_branch
      %26 = sbr.rel (0) target = $region17
    $region16: #{tpu_custom_call.1} parent=1 // pred_region
      %27 = dma.done [#allocation4], 128
    $region17: #{tpu_custom_call.1} parent=1 // pred_fallthru
      _
    %v28 = vld [vmem:[%s1] sm:$0x1]
    %v29 = vld [vmem:[#allocation3] sm:$0xff]
    %s30 = sld [smem:[#allocation2]]
    %v31 = vstv %s30
    %vm32 = vcmask 80896
    %v34 = vsel %vm32, %v28, 0
    %v37 = vsel %vm32, %v29, 0
    %39 = vmatprep.subr.mxu0 0.0
    %40 = vmatpush1.xpose.msra.mxu0 %v37
    %41 = vmatprep.subr.mxu0 0.0
    %42 = vmatpush1.xpose.msra.mxu0 0.0
    %43 = vmatprep.subr.mxu0 0.0
    %44 = vmatpush1.xpose.msra.mxu0 0.0
    %45 = vmatprep.subr.mxu0 0.0
    %46 = vmatpush1.xpose.msra.mxu0 0.0
    %47 = vmatprep.subr.mxu0 0.0
    %48 = vmatpush1.xpose.msra.mxu0 0.0
    %49 = vmatprep.subr.mxu0 0.0
    %50 = vmatpush1.xpose.msra.mxu0 0.0
    %51 = vmatprep.subr.mxu0 0.0
    %52 = vmatpush1.xpose.msra.mxu0 0.0
    %53 = vmatprep.subr.mxu0 0.0
    %54 = vmatpush1.xpose.msra.mxu0 0.0
    %55 = vmatprep.subr.mxu0 0.0
    %56 = vmatpush1.xpose.msra.mxu0 0.0
    %57 = vmatprep.subr.mxu0 0.0
    %58 = vmatpush1.xpose.msra.mxu0 0.0
    %59 = vmatprep.subr.mxu0 0.0
    %60 = vmatpush1.xpose.msra.mxu0 0.0
    %61 = vmatprep.subr.mxu0 0.0
    %62 = vmatpush1.xpose.msra.mxu0 0.0
    %63 = vmatprep.subr.mxu0 0.0
    %64 = vmatpush1.xpose.msra.mxu0 0.0
    %65 = vmatprep.subr.mxu0 0.0
    %66 = vmatpush1.xpose.msra.mxu0 0.0
    %67 = vmatprep.subr.mxu0 0.0
    %68 = vmatpush1.xpose.msra.mxu0 0.0
    %69 = vmatprep.subr.mxu0 0.0
    %70 = vmatpush1.xpose.msra.mxu0 0.0
    %71 = vmatprep.subr.mxu0 0.0
    %72 = vmatpush1.xpose.msra.mxu0 0.0
    %73 = vmatprep.subr.mxu0 0.0
    %74 = vmatpush1.xpose.msra.mxu0 0.0
    %75 = vmatprep.subr.mxu0 0.0
    %76 = vmatpush1.xpose.msra.mxu0 0.0
    %77 = vmatprep.subr.mxu0 0.0
    %78 = vmatpush1.xpose.msra.mxu0 0.0
    %79 = vmatprep.subr.mxu0 0.0
    %80 = vmatpush1.xpose.msra.mxu0 0.0
    %81 = vmatprep.subr.mxu0 0.0
    %82 = vmatpush1.xpose.msra.mxu0 0.0
    %83 = vmatprep.subr.mxu0 0.0
    %84 = vmatpush1.xpose.msra.mxu0 0.0
    %85 = vmatprep.subr.mxu0 0.0
    %86 = vmatpush1.xpose.msra.mxu0 0.0
    %87 = vmatprep.subr.mxu0 0.0
    %88 = vmatpush1.xpose.msra.mxu0 0.0
    %89 = vmatprep.subr.mxu0 0.0
    %90 = vmatpush1.xpose.msra.mxu0 0.0
    %91 = vmatprep.subr.mxu0 0.0
    %92 = vmatpush1.xpose.msra.mxu0 0.0
    %93 = vmatprep.subr.mxu0 0.0
    %94 = vmatpush1.xpose.msra.mxu0 0.0
    %95 = vmatprep.subr.mxu0 0.0
    %96 = vmatpush1.xpose.msra.mxu0 0.0
    %97 = vmatprep.subr.mxu0 0.0
    %98 = vmatpush1.xpose.msra.mxu0 0.0
    %99 = vmatprep.subr.mxu0 0.0
    %100 = vmatpush1.xpose.msra.mxu0 0.0
    %101 = vmatprep.subr.mxu0 0.0
    %102 = vmatpush1.xpose.msra.mxu0 0.0
    %103 = vmatprep.mubr.f32.mxu0 0.0
    %104 = vmatmul.mubr.f32.gmra.mrb[0].mxu0 %v34
    %v105 = vpop.f32.mrb[0].mxu0
    %v106 = vadd.f32 %v31, %v105
    %v107 = vpop.f32.mrb[0].mxu0
    %108 = vdwg.mxu0
    %vm109 = vcmask 57344
    %110 = vst.msk [vmem:[#allocation6] sm:$0x1] %vm109, %v106
    // Predicated region
    $region18: #{tpu_custom_call.1} parent=1 // pred_check
      _
    $region19: #{tpu_custom_call.1} parent=1 // pred_check_branch
      %112 = sbr.rel (0) target = $region21
    $region20: #{tpu_custom_call.1} parent=1 // pred_region
      %s114 = ssub.s32 16, 16
      %115 = vsyncadd [#allocation5], %s114
      %s117 = sshll.u32 [#allocation6], 4
      %s118 = int_to_ptr.vmem [resolvable:$true] %s117
      %120 = dma.vmem_to_hbm [thread:$0]  %s118, 16, %s3, [#allocation5]
    $region21: #{tpu_custom_call.1} parent=1 // pred_fallthru
      _
    // Predicated region
    $region22: #{tpu_custom_call.1} parent=1 // pred_check
      _
    $region23: #{tpu_custom_call.1} parent=1 // pred_check_branch
      %122 = sbr.rel (0) target = $region25
    $region24: #{tpu_custom_call.1} parent=1 // pred_region
      %123 = dma.done [#allocation5], 16
    $region25: #{tpu_custom_call.1} parent=1 // pred_fallthru
      _
    %124 = vsyncpa [#allocation4], 1
    %125 = vsyncpa [#allocation5], 1

</llo_original>
